<compile_context>
chip_gen: v7x
topology: tpu7x:2x2x1
jax: 0.10.0
libtpu: 0.0.40
codegen_flags: <defaults>
</compile_context>

<pallas_src>
import functools
import math

import jax
import jax.numpy as jnp
from jax import lax
from jax.experimental import pallas as pl
from jax.experimental.pallas import tpu as pltpu

_LANES = 128
_SUBLANES = 8


# ----------------------------------------------------------------------------
# Kernel 1: fused shared-weight q/k/v projection (y = x @ W.T), scale in q.
# ----------------------------------------------------------------------------
def _qkv_proj_kernel(q_enc_ref, k_enc_ref, v_enc_ref, w_ref,
                     q_out_ref, k_out_ref, v_out_ref, *, scale):
    w = w_ref[...]                                   # (tn, D) block of W ("out" rows)
    dims = (((1,), (1,)), ((), ()))                  # contract over W's "in" dim
    q = lax.dot_general(q_enc_ref[...], w, dims, preferred_element_type=jnp.float32)
    # Fold the 1/sqrt(d_model) attention scale into q (S*D muls instead of S*S).
    q_out_ref[...] = (q * jnp.float32(scale)).astype(q_out_ref.dtype)
    k = lax.dot_general(k_enc_ref[...], w, dims, preferred_element_type=jnp.float32)
    k_out_ref[...] = k.astype(k_out_ref.dtype)
    v = lax.dot_general(v_enc_ref[...], w, dims, preferred_element_type=jnp.float32)
    v_out_ref[...] = v.astype(v_out_ref.dtype)


# ----------------------------------------------------------------------------
# Kernel 2: flash-attention with online softmax, accumulate directly in o_ref.
# ----------------------------------------------------------------------------
def _lane_bcast(x, width):
    """x: (rows, _LANES) with identical values in every lane -> (rows, width)."""
    nl = x.shape[1]
    if width == nl:
        return x
    if width % nl == 0:
        return jnp.tile(x, (1, width // nl))
    if width < nl:
        return x[:, :width]
    return jnp.broadcast_to(x[:, :1], (x.shape[0], width))  # rare ragged fallback


def _flash_attn_kernel(q_ref, k_ref, v_ref, o_ref, m_scr, l_scr, *,
                       compute_dtype, approx_recip):
    kv_i = pl.program_id(1)

    @pl.when(kv_i == 0)
    def _():
        m_scr[...] = jnp.full_like(m_scr, -jnp.inf)
        l_scr[...] = jnp.zeros_like(l_scr)
        o_ref[...] = jnp.zeros_like(o_ref)

    q = q_ref[...]                                   # already scaled by 1/sqrt(d_model)
    k = k_ref[...]
    # q @ k.T via contraction over the last dims (no k transpose materialized).
    s = lax.dot_general(q, k, (((1,), (1,)), ((), ())),
                        preferred_element_type=jnp.float32)       # (tq, tk)

    # TODO(synk): optional boolean `mask` (masked_fill with -1e9) not wired
    #             through; the reference default mask=None is what we implement.

    tk = s.shape[1]
    d = o_ref.shape[1]

    m_prev = m_scr[...]                              # (tq, 128), lane-replicated
    l_prev = l_scr[...]
    m_cur = jnp.max(s, axis=1, keepdims=True)        # (tq, 1)
    m_next = jnp.maximum(m_prev, m_cur)              # (tq, 128)
    alpha = jnp.exp(m_prev - m_next)                 # (tq, 128)
    p = jnp.exp(s - _lane_bcast(m_next, tk))         # (tq, tk)

    l_scr[...] = alpha * l_prev + jnp.sum(p, axis=1, keepdims=True)
    m_scr[...] = m_next
    # Accumulate directly into the resident output block (no acc scratch).
    o_ref[...] = _lane_bcast(alpha, d) * o_ref[...] + jnp.dot(
        p.astype(compute_dtype), v_ref[...], preferred_element_type=jnp.float32)

    @pl.when(kv_i == pl.num_programs(1) - 1)
    def _():
        inv_l = pl.reciprocal(l_scr[...], approx=approx_recip)
        o_ref[...] = o_ref[...] * _lane_bcast(inv_l, d)


# ----------------------------------------------------------------------------
# Wrapper
# ----------------------------------------------------------------------------
def _vmem_limit_bytes():
    try:
        kind = jax.devices()[0].device_kind.lower()
    except Exception:  # pragma: no cover
        kind = ""
    if "v5" in kind or "v6" in kind:
        return 96 * 1024 * 1024      # v5e / v6e: 128 MiB physical VMEM
    return 48 * 1024 * 1024          # v7x (64 MiB/TC) or unknown: stay conservative


def _pick_tile(extent, target):
    """Largest multiple-of-8 tile <= target that divides extent (else full extent)."""
    if extent <= target:
        return extent
    t = (target // _SUBLANES) * _SUBLANES
    while t >= _SUBLANES:
        if extent % t == 0:
            return t
        t -= _SUBLANES
    return extent


def _pick_lane_tile(extent, target):
    """Largest multiple-of-128 tile <= target that divides extent (else full extent)."""
    if extent <= target:
        return extent
    t = (target // _LANES) * _LANES
    while t >= _LANES:
        if extent % t == 0:
            return t
        t -= _LANES
    return extent


def attention_pallas(enc_q, enc_k, enc_v, w_q, *, mask=None,
                     compute_dtype=jnp.float32,
                     block_rows=512, block_out=512, block_q=512, block_kv=512):
    """enc_*: [S, D] float32; w_q: [D, D] float32 (torch [out, in] layout)."""
    if mask is not None:
        # TODO(synk): boolean mask (masked_fill -1e9) not wired into the kernel.
        raise NotImplementedError("mask support not implemented")

    S, D = enc_q.shape
    assert enc_k.shape == (S, D) and enc_v.shape == (S, D)
    assert w_q.shape == (D, D)

    scale = 1.0 / math.sqrt(D)       # uses the TRUE d_model, even after padding

    # Pad d_model up to a lane-dense multiple of 128 (padded cols are inert zeros).
    Dp = max(_LANES, -(-D // _LANES) * _LANES)
    if Dp != D:
        pad = Dp - D
        enc_q = jnp.pad(enc_q, ((0, 0), (0, pad)))
        enc_k = jnp.pad(enc_k, ((0, 0), (0, pad)))
        enc_v = jnp.pad(enc_v, ((0, 0), (0, pad)))
        w_q = jnp.pad(w_q, ((0, pad), (0, pad)))

    # Cast in the wrapper (not per-tile in the kernel): halves W/encoding DMA
    # and their double-buffered VMEM footprint on the bf16 path.
    inter_dtype = compute_dtype
    enc_q = enc_q.astype(compute_dtype)
    enc_k = enc_k.astype(compute_dtype)
    enc_v = enc_v.astype(compute_dtype)
    w_q = w_q.astype(compute_dtype)

    bytes_per = jnp.dtype(inter_dtype).itemsize
    vmem_limit = _vmem_limit_bytes()
    budget = int(vmem_limit * 0.8)

    # --- flash tiles: big (amortize per-step overhead, fewer K/V passes) but
    # --- bounded by the generation's VMEM budget.
    tq_target, tk_target = block_q, block_kv
    while True:
        tq = _pick_tile(S, tq_target)
        tk = _pick_tile(S, tk_target)
        flash_bytes = (2 * tq * Dp * bytes_per            # q (double-buffered)
                       + 2 * 2 * tk * Dp * bytes_per      # k, v
                       + 2 * tq * Dp * 4                  # o (f32, resident)
                       + 2 * tq * _LANES * 4)             # m, l scratch
        if flash_bytes <= budget or (tq_target <= _LANES and tk_target <= _LANES):
            break
        if tk_target >= tq_target:
            tk_target = max(_LANES, tk_target // 2)
        else:
            tq_target = max(_LANES, tq_target // 2)

    # Keep >= 2 q tiles when possible so v7x's second TensorCore isn't idle.
    if S // tq < 2:
        half = tq // 2
        if half >= _SUBLANES and half % _SUBLANES == 0:
            tq = half

    # --- projection tiles: row tile + weight "out"-dim tile, VMEM-bounded.
    tr_target, tn_target = block_rows, block_out
    while True:
        tr = _pick_tile(S, tr_target)
        tn = _pick_lane_tile(Dp, tn_target)
        proj_bytes = (3 * 2 * tr * Dp * bytes_per          # q/k/v encodings
                      + 2 * tn * Dp * bytes_per            # W block
                      + 3 * 2 * tr * tn * bytes_per)       # outputs
        if proj_bytes <= budget or (tr_target <= _LANES and tn_target <= _LANES):
            break
        if tr_target >= tn_target:
            tr_target = max(_LANES, tr_target // 2)
        else:
            tn_target = max(_LANES, tn_target // 2)

    cparams_proj = pltpu.CompilerParams(
        dimension_semantics=("parallel", "parallel"),
        vmem_limit_bytes=vmem_limit)
    cparams_attn = pltpu.CompilerParams(
        dimension_semantics=("parallel", "arbitrary"),
        vmem_limit_bytes=vmem_limit)

    # --- Kernel 1: fused q/k/v projection (shared W_q), scale folded into q ---
    q, k, v = pl.pallas_call(
        functools.partial(_qkv_proj_kernel, scale=scale),
        out_shape=tuple(jax.ShapeDtypeStruct((S, Dp), inter_dtype) for _ in range(3)),
        grid_spec=pltpu.PrefetchScalarGridSpec(
            num_scalar_prefetch=0,
            grid=(S // tr, Dp // tn),
            in_specs=[
                pl.BlockSpec((tr, Dp), lambda r, n: (r, 0)),
                pl.BlockSpec((tr, Dp), lambda r, n: (r, 0)),
                pl.BlockSpec((tr, Dp), lambda r, n: (r, 0)),
                pl.BlockSpec((tn, Dp), lambda r, n: (n, 0)),
            ],
            out_specs=tuple(
                pl.BlockSpec((tr, tn), lambda r, n: (r, n)) for _ in range(3)),
        ),
        compiler_params=cparams_proj,
    )(enc_q, enc_k, enc_v, w_q)

    # --- Kernel 2: flash attention (q tiles "parallel", kv tiles "arbitrary") ---
    approx_recip = jnp.dtype(compute_dtype) != jnp.dtype(jnp.float32)
    out = pl.pallas_call(
        functools.partial(_flash_attn_kernel, compute_dtype=compute_dtype,
                          approx_recip=approx_recip),
        out_shape=jax.ShapeDtypeStruct((S, Dp), jnp.float32),
        grid_spec=pltpu.PrefetchScalarGridSpec(
            num_scalar_prefetch=0,
            grid=(S // tq, S // tk),
            in_specs=[
                pl.BlockSpec((tq, Dp), lambda qi, ki: (qi, 0)),
                pl.BlockSpec((tk, Dp), lambda qi, ki: (ki, 0)),
                pl.BlockSpec((tk, Dp), lambda qi, ki: (ki, 0)),
            ],
            out_specs=pl.BlockSpec((tq, Dp), lambda qi, ki: (qi, 0)),
            scratch_shapes=[
                pltpu.VMEM((tq, _LANES), jnp.float32),   # running max m (lane-replicated)
                pltpu.VMEM((tq, _LANES), jnp.float32),   # running denom l
            ],
        ),
        compiler_params=cparams_attn,
    )(q, k, v)

    return out[:, :D] if Dp != D else out


def attention_reference(enc_q, enc_k, enc_v, w_q):
    """Pure-JAX (f32) reference mirroring the PyTorch forward()."""
    q = enc_q @ w_q.T
    k = enc_k @ w_q.T
    v = enc_v @ w_q.T
    sims = q @ k.T
    scaled = sims / jnp.sqrt(jnp.float32(k.shape[1]))
    p = jax.nn.softmax(scaled, axis=1)
    return p @ v


if __name__ == "__main__":
    # Small shapes consistent with the module: 2-D token encodings [seq, d_model].
    seq, d_model = 8, 32

    key = jax.random.PRNGKey(0)
    k0, k1, k2, k3 = jax.random.split(key, 4)

    enc_q = jax.random.normal(k0, (seq, d_model), dtype=jnp.float32)
    enc_k = jax.random.normal(k1, (seq, d_model), dtype=jnp.float32)
    enc_v = jax.random.normal(k2, (seq, d_model), dtype=jnp.float32)

    # Deterministic parameter init (torch nn.Linear shape: [out_features, in_features]).
    bound = 1.0 / math.sqrt(d_model)
    w_q = jax.random.uniform(
        k3, (d_model, d_model), minval=-bound, maxval=bound, dtype=jnp.float32
    )

    ref = attention_reference(enc_q, enc_k, enc_v, w_q)

    # Full-f32 path (matches torch numerics; exact reciprocal on this path).
    out_f32 = jax.block_until_ready(
        attention_pallas(enc_q, enc_k, enc_v, w_q, compute_dtype=jnp.float32))
    assert out_f32.shape == (seq, d_model)
    assert jnp.allclose(out_f32, ref, atol=1e-4, rtol=1e-4), "f32 mismatch vs reference"

    # bf16-MXU path (v6e/v7x throughput; f32 accumulation). Looser tolerance.
    out_bf16 = jax.block_until_ready(
        attention_pallas(enc_q, enc_k, enc_v, w_q, compute_dtype=jnp.bfloat16))
    assert out_bf16.shape == (seq, d_model)
    assert jnp.allclose(out_bf16, ref, atol=7e-2, rtol=7e-2), "bf16 mismatch vs reference"

    print("KERNEL_OK")
</pallas_src>

<mosaic_0001>
module attributes {stable_mosaic.version = 11 : i64} {
  func.func @_qkv_proj_kernel(%arg0: i32, %arg1: i32, %arg2: memref<8x128xf32, #tpu.memory_space<vmem>>, %arg3: memref<8x128xf32, #tpu.memory_space<vmem>>, %arg4: memref<8x128xf32, #tpu.memory_space<vmem>>, %arg5: memref<128x128xf32, #tpu.memory_space<vmem>>, %arg6: memref<8x128xf32, #tpu.memory_space<vmem>>, %arg7: memref<8x128xf32, #tpu.memory_space<vmem>>, %arg8: memref<8x128xf32, #tpu.memory_space<vmem>>) attributes {dimension_semantics = [#tpu.dimension_semantics<parallel>, #tpu.dimension_semantics<parallel>], iteration_bounds = array<i64: 1, 1>, scalar_prefetch = 0 : i64, scratch_operands = 0 : i64, tpu.core_type = #tpu.core_type<tc>, window_params = [{transform_indices = @transform_0, window_bounds = array<i64: 8, 128>}, {transform_indices = @transform_1, window_bounds = array<i64: 8, 128>}, {transform_indices = @transform_2, window_bounds = array<i64: 8, 128>}, {transform_indices = @transform_3, window_bounds = array<i64: 128, 128>}, {transform_indices = @transform_4, window_bounds = array<i64: 8, 128>}, {transform_indices = @transform_5, window_bounds = array<i64: 8, 128>}, {transform_indices = @transform_6, window_bounds = array<i64: 8, 128>}]} {
    %c0 = arith.constant 0 : index
    %c0_0 = arith.constant 0 : index
    %0 = vector.load %arg5[%c0, %c0_0] : memref<128x128xf32, #tpu.memory_space<vmem>>, vector<128x128xf32>
    %c0_1 = arith.constant 0 : index
    %c0_2 = arith.constant 0 : index
    %1 = vector.load %arg2[%c0_1, %c0_2] : memref<8x128xf32, #tpu.memory_space<vmem>>, vector<8x128xf32>
    %cst = arith.constant dense<0.000000e+00> : vector<8x128xf32>
    %2 = tpu.matmul %1, %0, %cst {dimension_numbers = #tpu.dot_dimension_numbers<[1], [1], [0], [0], [0, 0, 1, 0], [], []>} : vector<8x128xf32>, vector<128x128xf32>, vector<8x128xf32> -> vector<8x128xf32>
    %cst_3 = arith.constant 0.176776692 : f32
    %3 = vector.broadcast %cst_3 : f32 to vector<8x128xf32>
    %4 = arith.mulf %2, %3 : vector<8x128xf32>
    %c0_4 = arith.constant 0 : index
    %c0_5 = arith.constant 0 : index
    %5 = vector.load %arg6[%c0_4, %c0_5] : memref<8x128xf32, #tpu.memory_space<vmem>>, vector<8x128xf32>
    tpu.vector_store %arg6[%c0_4, %c0_5], %4 {strides = array<i32>} : memref<8x128xf32, #tpu.memory_space<vmem>>, vector<8x128xf32>,
    %c0_6 = arith.constant 0 : index
    %c0_7 = arith.constant 0 : index
    %6 = vector.load %arg3[%c0_6, %c0_7] : memref<8x128xf32, #tpu.memory_space<vmem>>, vector<8x128xf32>
    %cst_8 = arith.constant dense<0.000000e+00> : vector<8x128xf32>
    %7 = tpu.matmul %6, %0, %cst_8 {dimension_numbers = #tpu.dot_dimension_numbers<[1], [1], [0], [0], [0, 0, 1, 0], [], []>} : vector<8x128xf32>, vector<128x128xf32>, vector<8x128xf32> -> vector<8x128xf32>
    %c0_9 = arith.constant 0 : index
    %c0_10 = arith.constant 0 : index
    %8 = vector.load %arg7[%c0_9, %c0_10] : memref<8x128xf32, #tpu.memory_space<vmem>>, vector<8x128xf32>
    tpu.vector_store %arg7[%c0_9, %c0_10], %7 {strides = array<i32>} : memref<8x128xf32, #tpu.memory_space<vmem>>, vector<8x128xf32>,
    %c0_11 = arith.constant 0 : index
    %c0_12 = arith.constant 0 : index
    %9 = vector.load %arg4[%c0_11, %c0_12] : memref<8x128xf32, #tpu.memory_space<vmem>>, vector<8x128xf32>
    %cst_13 = arith.constant dense<0.000000e+00> : vector<8x128xf32>
    %10 = tpu.matmul %9, %0, %cst_13 {dimension_numbers = #tpu.dot_dimension_numbers<[1], [1], [0], [0], [0, 0, 1, 0], [], []>} : vector<8x128xf32>, vector<128x128xf32>, vector<8x128xf32> -> vector<8x128xf32>
    %c0_14 = arith.constant 0 : index
    %c0_15 = arith.constant 0 : index
    %11 = vector.load %arg8[%c0_14, %c0_15] : memref<8x128xf32, #tpu.memory_space<vmem>>, vector<8x128xf32>
    tpu.vector_store %arg8[%c0_14, %c0_15], %10 {strides = array<i32>} : memref<8x128xf32, #tpu.memory_space<vmem>>, vector<8x128xf32>,
    return
  }
  func.func @transform_0(%arg0: i32, %arg1: i32) -> (i32, i32) {
    %c0_i32 = arith.constant 0 : i32
    %c0_i32_0 = arith.constant 0 : i32
    return %arg0, %c0_i32 : i32, i32
  }
  func.func @transform_1(%arg0: i32, %arg1: i32) -> (i32, i32) {
    %c0_i32 = arith.constant 0 : i32
    %c0_i32_0 = arith.constant 0 : i32
    return %arg0, %c0_i32 : i32, i32
  }
  func.func @transform_2(%arg0: i32, %arg1: i32) -> (i32, i32) {
    %c0_i32 = arith.constant 0 : i32
    %c0_i32_0 = arith.constant 0 : i32
    return %arg0, %c0_i32 : i32, i32
  }
  func.func @transform_3(%arg0: i32, %arg1: i32) -> (i32, i32) {
    %c0_i32 = arith.constant 0 : i32
    %c0_i32_0 = arith.constant 0 : i32
    return %arg1, %c0_i32 : i32, i32
  }
  func.func @transform_4(%arg0: i32, %arg1: i32) -> (i32, i32) {
    %c0_i32 = arith.constant 0 : i32
    return %arg0, %arg1 : i32, i32
  }
  func.func @transform_5(%arg0: i32, %arg1: i32) -> (i32, i32) {
    %c0_i32 = arith.constant 0 : i32
    return %arg0, %arg1 : i32, i32
  }
  func.func @transform_6(%arg0: i32, %arg1: i32) -> (i32, i32) {
    %c0_i32 = arith.constant 0 : i32
    return %arg0, %arg1 : i32, i32
  }
}

</mosaic_0001>

<llo_original>
// kernel: tpu_custom_call.1
$region0: #{tpu_custom_call.1}
  #allocation0 [shape = 'u32[]', space=smem, size = 0x4, offset = 0x4, fixed_abs, tag = 'smem constant byte address 0x4 - core index']
  #allocation1 [shape = 'u32[144,128]{1,0:T(1,128)}', space=vmem, size = 0x12000, scoped, tag = 'internal scratch']
  %s0 = inlined_call_operand.hbm [shape: f32[8,128], index: 0, kind: input, shape index: {}]
  %s1 = inlined_call_operand.hbm [shape: f32[8,128], index: 1, kind: input, shape index: {}]
  %s2 = inlined_call_operand.hbm [shape: f32[8,128], index: 2, kind: input, shape index: {}]
  %s3 = inlined_call_operand.hbm [shape: f32[128,128], index: 3, kind: input, shape index: {}]
  %s4 = inlined_call_operand.hbm [shape: f32[8,128], index: 4, kind: output, shape index: {0}]
  %s5 = inlined_call_operand.hbm [shape: f32[8,128], index: 5, kind: output, shape index: {1}]
  %s6 = inlined_call_operand.hbm [shape: f32[8,128], index: 6, kind: output, shape index: {2}]
  %7 = xla_tuple %s4, %s5, %s6
  %s8 = sld [smem:[#allocation0]]
  $region58: #{tpu_custom_call.1} parent=0
    _
  %s10 = ssub.s32 1, %s8
  %s11 = scalar_select 0, %s10, %s8
  $region1: #{tpu_custom_call.1} parent=0
    #allocation2 [shape = 'u8[4096]{0}', space=vmem, size = 0x1000, scoped, tag = 'input window, operand 0, single buffered']
    #allocation3 [shape = 's32[1]{0}', space=sflag, size = 0x4, scoped, tag = 'scoped memory for tpu_custom_call.1']
    #allocation4 [shape = 's32[1]{0}', space=sflag, size = 0x4, scoped, tag = 'scoped memory for tpu_custom_call.1']
    #allocation5 [shape = 'u8[4096]{0}', space=vmem, size = 0x1000, scoped, tag = 'input window, operand 1, single buffered']
    #allocation6 [shape = 's32[1]{0}', space=sflag, size = 0x4, scoped, tag = 'scoped memory for tpu_custom_call.1']
    #allocation7 [shape = 'u8[4096]{0}', space=vmem, size = 0x1000, scoped, tag = 'input window, operand 2, single buffered']
    #allocation8 [shape = 'u8[65536]{0}', space=vmem, size = 0x10000, scoped, tag = 'input window, operand 3, single buffered']
    #allocation9 [shape = 's32[1]{0}', space=sflag, size = 0x4, scoped, tag = 'scoped memory for tpu_custom_call.1']
    #allocation10 [shape = 'u8[4096]{0}', space=vmem, size = 0x1000, scoped, tag = 'output window, operand 0, single buffered']
    #allocation11 [shape = 'u8[4096]{0}', space=vmem, size = 0x1000, scoped, tag = 'output window, operand 1, single buffered']
    #allocation12 [shape = 's32[1]{0}', space=sflag, size = 0x4, scoped, tag = 'scoped memory for tpu_custom_call.1']
    #allocation13 [shape = 'u8[4096]{0}', space=vmem, size = 0x1000, scoped, tag = 'output window, operand 2, single buffered']
    %12 = vsyncpa [#allocation3], 0
    %13 = vsyncpa [#allocation6], 0
    %14 = vsyncpa [#allocation9], 0
    %15 = vsyncpa [#allocation4], 0
    %16 = vsyncpa [#allocation12], 0
    // Predicated region
    $region2: #{tpu_custom_call.1} parent=1 // pred_check
      _
    $region3: #{tpu_custom_call.1} parent=1 // pred_check_branch
      %18 = sbr.rel (0) target = $region5
    $region4: #{tpu_custom_call.1} parent=1 // pred_region
      %s20 = ssub.s32 128, 128
      %21 = vsyncadd [#allocation3], %s20
      %s23 = sshll.u32 [#allocation2], 4
      %s24 = int_to_ptr.vmem [resolvable:$true] %s23
      %26 = dma.hbm_to_vmem [thread:$0]  %s0, 128, %s24, [#allocation3]
    $region5: #{tpu_custom_call.1} parent=1 // pred_fallthru
      _
    // Predicated region
    $region6: #{tpu_custom_call.1} parent=1 // pred_check
      _
    $region7: #{tpu_custom_call.1} parent=1 // pred_check_branch
      %28 = sbr.rel (0) target = $region9
    $region8: #{tpu_custom_call.1} parent=1 // pred_region
      %s30 = ssub.s32 128, 128
      %31 = vsyncadd [#allocation6], %s30
      %s33 = sshll.u32 [#allocation5], 4
      %s34 = int_to_ptr.vmem [resolvable:$true] %s33
      %36 = dma.hbm_to_vmem [thread:$0]  %s1, 128, %s34, [#allocation6]
    $region9: #{tpu_custom_call.1} parent=1 // pred_fallthru
      _
    // Predicated region
    $region10: #{tpu_custom_call.1} parent=1 // pred_check
      _
    $region11: #{tpu_custom_call.1} parent=1 // pred_check_branch
      %38 = sbr.rel (0) target = $region13
    $region12: #{tpu_custom_call.1} parent=1 // pred_region
      %s40 = ssub.s32 128, 128
      %41 = vsyncadd [#allocation6], %s40
      %s43 = sshll.u32 [#allocation7], 4
      %s44 = int_to_ptr.vmem [resolvable:$true] %s43
      %46 = dma.hbm_to_vmem [thread:$0]  %s2, 128, %s44, [#allocation6]
    $region13: #{tpu_custom_call.1} parent=1 // pred_fallthru
      _
    // Predicated region
    $region14: #{tpu_custom_call.1} parent=1 // pred_check
      _
    $region15: #{tpu_custom_call.1} parent=1 // pred_check_branch
      %48 = sbr.rel (0) target = $region17
    $region16: #{tpu_custom_call.1} parent=1 // pred_region
      %s50 = ssub.s32 2048, 2048
      %51 = vsyncadd [#allocation9], %s50
      %s52 = sshll.u32 [#allocation8], 4
      %s53 = int_to_ptr.vmem [resolvable:$true] %s52
      %58 = dma.hbm_to_vmem [thread:$0]  %s3, 2048, %s53, [#allocation9], 128, 128, 8
    $region17: #{tpu_custom_call.1} parent=1 // pred_fallthru
      _
    // Predicated region
    $region18: #{tpu_custom_call.1} parent=1 // pred_check
      _
    $region19: #{tpu_custom_call.1} parent=1 // pred_check_branch
      %60 = sbr.rel (0) target = $region21
    $region20: #{tpu_custom_call.1} parent=1 // pred_region
      %61 = dma.done [#allocation3], 128
    $region21: #{tpu_custom_call.1} parent=1 // pred_fallthru
      _
    // Predicated region
    $region22: #{tpu_custom_call.1} parent=1 // pred_check
      _
    $region23: #{tpu_custom_call.1} parent=1 // pred_check_branch
      %63 = sbr.rel (0) target = $region25
    $region24: #{tpu_custom_call.1} parent=1 // pred_region
      %64 = dma.done [#allocation6], 128
    $region25: #{tpu_custom_call.1} parent=1 // pred_fallthru
      _
    // Predicated region
    $region26: #{tpu_custom_call.1} parent=1 // pred_check
      _
    $region27: #{tpu_custom_call.1} parent=1 // pred_check_branch
      %66 = sbr.rel (0) target = $region29
    $region28: #{tpu_custom_call.1} parent=1 // pred_region
      %67 = dma.done [#allocation6], 128
    $region29: #{tpu_custom_call.1} parent=1 // pred_fallthru
      _
    // Predicated region
    $region30: #{tpu_custom_call.1} parent=1 // pred_check
      _
    $region31: #{tpu_custom_call.1} parent=1 // pred_check_branch
      %69 = sbr.rel (0) target = $region33
    $region32: #{tpu_custom_call.1} parent=1 // pred_region
      %70 = dma.done [#allocation9], 2048
    $region33: #{tpu_custom_call.1} parent=1 // pred_fallthru
      _
    %v71 = vld [vmem:[#allocation8] sm:$0xff]
    %v72 = vld [vmem:[#allocation8 + $0x8] sm:$0xff]
    %v73 = vld [vmem:[#allocation8 + $0x10] sm:$0xff]
    %v74 = vld [vmem:[#allocation8 + $0x18] sm:$0xff]
    %v75 = vld [vmem:[#allocation8 + $0x20] sm:$0xff]
    %v76 = vld [vmem:[#allocation8 + $0x28] sm:$0xff]
    %v77 = vld [vmem:[#allocation8 + $0x30] sm:$0xff]
    %v78 = vld [vmem:[#allocation8 + $0x38] sm:$0xff]
    %v79 = vld [vmem:[#allocation8 + $0x40] sm:$0xff]
    %v80 = vld [vmem:[#allocation8 + $0x48] sm:$0xff]
    %v81 = vld [vmem:[#allocation8 + $0x50] sm:$0xff]
    %v82 = vld [vmem:[#allocation8 + $0x58] sm:$0xff]
    %v83 = vld [vmem:[#allocation8 + $0x60] sm:$0xff]
    %v84 = vld [vmem:[#allocation8 + $0x68] sm:$0xff]
    %v85 = vld [vmem:[#allocation8 + $0x70] sm:$0xff]
    %v86 = vld [vmem:[#allocation8 + $0x78] sm:$0xff]
    %v87 = vld [vmem:[#allocation2] sm:$0xff]
    %88 = vmatprep.subr.mxu0 0.0
    %89 = vmatpush1.xpose.msra.mxu0 %v71
    %90 = vmatprep.subr.mxu0 0.0
    %91 = vmatpush1.xpose.msra.mxu0 %v72
    %92 = vmatprep.subr.mxu0 0.0
    %93 = vmatpush1.xpose.msra.mxu0 %v73
    %94 = vmatprep.subr.mxu0 0.0
    %95 = vmatpush1.xpose.msra.mxu0 %v74
    %96 = vmatprep.subr.mxu0 0.0
    %97 = vmatpush1.xpose.msra.mxu0 %v75
    %98 = vmatprep.subr.mxu0 0.0
    %99 = vmatpush1.xpose.msra.mxu0 %v76
    %100 = vmatprep.subr.mxu0 0.0
    %101 = vmatpush1.xpose.msra.mxu0 %v77
    %102 = vmatprep.subr.mxu0 0.0
    %103 = vmatpush1.xpose.msra.mxu0 %v78
    %104 = vmatprep.subr.mxu0 0.0
    %105 = vmatpush1.xpose.msra.mxu0 %v79
    %106 = vmatprep.subr.mxu0 0.0
    %107 = vmatpush1.xpose.msra.mxu0 %v80
    %108 = vmatprep.subr.mxu0 0.0
    %109 = vmatpush1.xpose.msra.mxu0 %v81
    %110 = vmatprep.subr.mxu0 0.0
    %111 = vmatpush1.xpose.msra.mxu0 %v82
    %112 = vmatprep.subr.mxu0 0.0
    %113 = vmatpush1.xpose.msra.mxu0 %v83
    %114 = vmatprep.subr.mxu0 0.0
    %115 = vmatpush1.xpose.msra.mxu0 %v84
    %116 = vmatprep.subr.mxu0 0.0
    %117 = vmatpush1.xpose.msra.mxu0 %v85
    %118 = vmatprep.subr.mxu0 0.0
    %119 = vmatpush1.xpose.msra.mxu0 %v86
    %120 = vmatprep.subr.mxu0 0.0
    %121 = vmatpush1.xpose.msra.mxu0 0.0
    %122 = vmatprep.subr.mxu0 0.0
    %123 = vmatpush1.xpose.msra.mxu0 0.0
    %124 = vmatprep.subr.mxu0 0.0
    %125 = vmatpush1.xpose.msra.mxu0 0.0
    %126 = vmatprep.subr.mxu0 0.0
    %127 = vmatpush1.xpose.msra.mxu0 0.0
    %128 = vmatprep.subr.mxu0 0.0
    %129 = vmatpush1.xpose.msra.mxu0 0.0
    %130 = vmatprep.subr.mxu0 0.0
    %131 = vmatpush1.xpose.msra.mxu0 0.0
    %132 = vmatprep.subr.mxu0 0.0
    %133 = vmatpush1.xpose.msra.mxu0 0.0
    %134 = vmatprep.subr.mxu0 0.0
    %135 = vmatpush1.xpose.msra.mxu0 0.0
    %136 = vmatprep.subr.mxu0 0.0
    %137 = vmatpush1.xpose.msra.mxu0 0.0
    %138 = vmatprep.subr.mxu0 0.0
    %139 = vmatpush1.xpose.msra.mxu0 0.0
    %140 = vmatprep.subr.mxu0 0.0
    %141 = vmatpush1.xpose.msra.mxu0 0.0
    %142 = vmatprep.subr.mxu0 0.0
    %143 = vmatpush1.xpose.msra.mxu0 0.0
    %144 = vmatprep.subr.mxu0 0.0
    %145 = vmatpush1.xpose.msra.mxu0 0.0
    %146 = vmatprep.subr.mxu0 0.0
    %147 = vmatpush1.xpose.msra.mxu0 0.0
    %148 = vmatprep.subr.mxu0 0.0
    %149 = vmatpush1.xpose.msra.mxu0 0.0
    %150 = vmatprep.subr.mxu0 0.0
    %151 = vmatpush1.xpose.msra.mxu0 0.0
    %152 = vmatprep.mubr.f32.mxu0 0.0
    %153 = vmatmul.mubr.f32.gmra.mrb[0].mxu0 %v87
    %v154 = vpop.f32.mrb[0].mxu0
    %v155 = vadd.f32 0.0, %v154
    %v156 = vpop.f32.mrb[0].mxu0
    %157 = vdwg.mxu0
    %v158 = vmul.f32 %v155, 0.17677669
    %159 = vst [vmem:[#allocation10] sm:$0xff] %v158
    %v160 = vld [vmem:[#allocation5] sm:$0xff]
    %161 = vmatprep.subr.mxu0 0.0
    %162 = vmatpush1.xpose.msra.mxu0 %v71
    %163 = vmatprep.subr.mxu0 0.0
    %164 = vmatpush1.xpose.msra.mxu0 %v72
    %165 = vmatprep.subr.mxu0 0.0
    %166 = vmatpush1.xpose.msra.mxu0 %v73
    %167 = vmatprep.subr.mxu0 0.0
    %168 = vmatpush1.xpose.msra.mxu0 %v74
    %169 = vmatprep.subr.mxu0 0.0
    %170 = vmatpush1.xpose.msra.mxu0 %v75
    %171 = vmatprep.subr.mxu0 0.0
    %172 = vmatpush1.xpose.msra.mxu0 %v76
    %173 = vmatprep.subr.mxu0 0.0
    %174 = vmatpush1.xpose.msra.mxu0 %v77
    %175 = vmatprep.subr.mxu0 0.0
    %176 = vmatpush1.xpose.msra.mxu0 %v78
    %177 = vmatprep.subr.mxu0 0.0
    %178 = vmatpush1.xpose.msra.mxu0 %v79
    %179 = vmatprep.subr.mxu0 0.0
    %180 = vmatpush1.xpose.msra.mxu0 %v80
    %181 = vmatprep.subr.mxu0 0.0
    %182 = vmatpush1.xpose.msra.mxu0 %v81
    %183 = vmatprep.subr.mxu0 0.0
    %184 = vmatpush1.xpose.msra.mxu0 %v82
    %185 = vmatprep.subr.mxu0 0.0
    %186 = vmatpush1.xpose.msra.mxu0 %v83
    %187 = vmatprep.subr.mxu0 0.0
    %188 = vmatpush1.xpose.msra.mxu0 %v84
    %189 = vmatprep.subr.mxu0 0.0
    %190 = vmatpush1.xpose.msra.mxu0 %v85
    %191 = vmatprep.subr.mxu0 0.0
    %192 = vmatpush1.xpose.msra.mxu0 %v86
    %193 = vmatprep.subr.mxu0 0.0
    %194 = vmatpush1.xpose.msra.mxu0 0.0
    %195 = vmatprep.subr.mxu0 0.0
    %196 = vmatpush1.xpose.msra.mxu0 0.0
    %197 = vmatprep.subr.mxu0 0.0
    %198 = vmatpush1.xpose.msra.mxu0 0.0
    %199 = vmatprep.subr.mxu0 0.0
    %200 = vmatpush1.xpose.msra.mxu0 0.0
    %201 = vmatprep.subr.mxu0 0.0
    %202 = vmatpush1.xpose.msra.mxu0 0.0
    %203 = vmatprep.subr.mxu0 0.0
    %204 = vmatpush1.xpose.msra.mxu0 0.0
    %205 = vmatprep.subr.mxu0 0.0
    %206 = vmatpush1.xpose.msra.mxu0 0.0
    %207 = vmatprep.subr.mxu0 0.0
    %208 = vmatpush1.xpose.msra.mxu0 0.0
    %209 = vmatprep.subr.mxu0 0.0
    %210 = vmatpush1.xpose.msra.mxu0 0.0
    %211 = vmatprep.subr.mxu0 0.0
    %212 = vmatpush1.xpose.msra.mxu0 0.0
    %213 = vmatprep.subr.mxu0 0.0
    %214 = vmatpush1.xpose.msra.mxu0 0.0
    %215 = vmatprep.subr.mxu0 0.0
    %216 = vmatpush1.xpose.msra.mxu0 0.0
    %217 = vmatprep.subr.mxu0 0.0
    %218 = vmatpush1.xpose.msra.mxu0 0.0
    %219 = vmatprep.subr.mxu0 0.0
    %220 = vmatpush1.xpose.msra.mxu0 0.0
    %221 = vmatprep.subr.mxu0 0.0
    %222 = vmatpush1.xpose.msra.mxu0 0.0
    %223 = vmatprep.subr.mxu0 0.0
    %224 = vmatpush1.xpose.msra.mxu0 0.0
    %225 = vmatprep.mubr.f32.mxu0 0.0
    %226 = vmatmul.mubr.f32.gmra.mrb[0].mxu0 %v160
    %v227 = vpop.f32.mrb[0].mxu0
    %v228 = vadd.f32 0.0, %v227
    %v229 = vpop.f32.mrb[0].mxu0
    %230 = vdwg.mxu0
    %231 = vst [vmem:[#allocation11] sm:$0xff] %v228
    %v232 = vld [vmem:[#allocation7] sm:$0xff]
    %233 = vmatprep.subr.mxu0 0.0
    %234 = vmatpush1.xpose.msra.mxu0 %v71
    %235 = vmatprep.subr.mxu0 0.0
    %236 = vmatpush1.xpose.msra.mxu0 %v72
    %237 = vmatprep.subr.mxu0 0.0
    %238 = vmatpush1.xpose.msra.mxu0 %v73
    %239 = vmatprep.subr.mxu0 0.0
    %240 = vmatpush1.xpose.msra.mxu0 %v74
    %241 = vmatprep.subr.mxu0 0.0
    %242 = vmatpush1.xpose.msra.mxu0 %v75
    %243 = vmatprep.subr.mxu0 0.0
    %244 = vmatpush1.xpose.msra.mxu0 %v76
    %245 = vmatprep.subr.mxu0 0.0
    %246 = vmatpush1.xpose.msra.mxu0 %v77
    %247 = vmatprep.subr.mxu0 0.0
    %248 = vmatpush1.xpose.msra.mxu0 %v78
    %249 = vmatprep.subr.mxu0 0.0
    %250 = vmatpush1.xpose.msra.mxu0 %v79
    %251 = vmatprep.subr.mxu0 0.0
    %252 = vmatpush1.xpose.msra.mxu0 %v80
    %253 = vmatprep.subr.mxu0 0.0
    %254 = vmatpush1.xpose.msra.mxu0 %v81
    %255 = vmatprep.subr.mxu0 0.0
    %256 = vmatpush1.xpose.msra.mxu0 %v82
    %257 = vmatprep.subr.mxu0 0.0
    %258 = vmatpush1.xpose.msra.mxu0 %v83
    %259 = vmatprep.subr.mxu0 0.0
    %260 = vmatpush1.xpose.msra.mxu0 %v84
    %261 = vmatprep.subr.mxu0 0.0
    %262 = vmatpush1.xpose.msra.mxu0 %v85
    %263 = vmatprep.subr.mxu0 0.0
    %264 = vmatpush1.xpose.msra.mxu0 %v86
    %265 = vmatprep.subr.mxu0 0.0
    %266 = vmatpush1.xpose.msra.mxu0 0.0
    %267 = vmatprep.subr.mxu0 0.0
    %268 = vmatpush1.xpose.msra.mxu0 0.0
    %269 = vmatprep.subr.mxu0 0.0
    %270 = vmatpush1.xpose.msra.mxu0 0.0
    %271 = vmatprep.subr.mxu0 0.0
    %272 = vmatpush1.xpose.msra.mxu0 0.0
    %273 = vmatprep.subr.mxu0 0.0
    %274 = vmatpush1.xpose.msra.mxu0 0.0
    %275 = vmatprep.subr.mxu0 0.0
    %276 = vmatpush1.xpose.msra.mxu0 0.0
    %277 = vmatprep.subr.mxu0 0.0
    %278 = vmatpush1.xpose.msra.mxu0 0.0
    %279 = vmatprep.subr.mxu0 0.0
    %280 = vmatpush1.xpose.msra.mxu0 0.0
    %281 = vmatprep.subr.mxu0 0.0
    %282 = vmatpush1.xpose.msra.mxu0 0.0
    %283 = vmatprep.subr.mxu0 0.0
    %284 = vmatpush1.xpose.msra.mxu0 0.0
    %285 = vmatprep.subr.mxu0 0.0
    %286 = vmatpush1.xpose.msra.mxu0 0.0
    %287 = vmatprep.subr.mxu0 0.0
    %288 = vmatpush1.xpose.msra.mxu0 0.0
    %289 = vmatprep.subr.mxu0 0.0
    %290 = vmatpush1.xpose.msra.mxu0 0.0
    %291 = vmatprep.subr.mxu0 0.0
    %292 = vmatpush1.xpose.msra.mxu0 0.0
    %293 = vmatprep.subr.mxu0 0.0
    %294 = vmatpush1.xpose.msra.mxu0 0.0
    %295 = vmatprep.subr.mxu0 0.0
    %296 = vmatpush1.xpose.msra.mxu0 0.0
    %297 = vmatprep.mubr.f32.mxu0 0.0
    %298 = vmatmul.mubr.f32.gmra.mrb[0].mxu0 %v232
    %v299 = vpop.f32.mrb[0].mxu0
    %v300 = vadd.f32 0.0, %v299
    %v301 = vpop.f32.mrb[0].mxu0
    %302 = vdwg.mxu0
    %303 = vst [vmem:[#allocation13] sm:$0xff] %v300
    // Predicated region
    $region34: #{tpu_custom_call.1} parent=1 // pred_check
      _
    $region35: #{tpu_custom_call.1} parent=1 // pred_check_branch
      %305 = sbr.rel (0) target = $region37
    $region36: #{tpu_custom_call.1} parent=1 // pred_region
      %s307 = ssub.s32 128, 128
      %308 = vsyncadd [#allocation4], %s307
      %s310 = sshll.u32 [#allocation10], 4
      %s311 = int_to_ptr.vmem [resolvable:$true] %s310
      %313 = dma.vmem_to_hbm [thread:$0]  %s311, 128, %s4, [#allocation4]
    $region37: #{tpu_custom_call.1} parent=1 // pred_fallthru
      _
    // Predicated region
    $region38: #{tpu_custom_call.1} parent=1 // pred_check
      _
    $region39: #{tpu_custom_call.1} parent=1 // pred_check_branch
      %315 = sbr.rel (0) target = $region41
    $region40: #{tpu_custom_call.1} parent=1 // pred_region
      %s317 = ssub.s32 128, 128
      %318 = vsyncadd [#allocation12], %s317
      %s320 = sshll.u32 [#allocation11], 4
      %s321 = int_to_ptr.vmem [resolvable:$true] %s320
      %323 = dma.vmem_to_hbm [thread:$0]  %s321, 128, %s5, [#allocation12]
    $region41: #{tpu_custom_call.1} parent=1 // pred_fallthru
      _
    // Predicated region
    $region42: #{tpu_custom_call.1} parent=1 // pred_check
      _
    $region43: #{tpu_custom_call.1} parent=1 // pred_check_branch
      %325 = sbr.rel (0) target = $region45
    $region44: #{tpu_custom_call.1} parent=1 // pred_region
      %s327 = ssub.s32 128, 128
      %328 = vsyncadd [#allocation12], %s327
      %s330 = sshll.u32 [#allocation13], 4
      %s331 = int_to_ptr.vmem [resolvable:$true] %s330
      %333 = dma.vmem_to_hbm [thread:$0]  %s331, 128, %s6, [#allocation12]
    $region45: #{tpu_custom_call.1} parent=1 // pred_fallthru
      _
    // Predicated region
    $region46: #{tpu_custom_call.1} parent=1 // pred_check
      _
    $region47: #{tpu_custom_call.1} parent=1 // pred_check_branch
      %335 = sbr.rel (0) target = $region49
    $region48: #{tpu_custom_call.1} parent=1 // pred_region
      %336 = dma.done [#allocation4], 128
    $region49: #{tpu_custom_call.1} parent=1 // pred_fallthru
      _
    // Predicated region
    $region50: #{tpu_custom_call.1} parent=1 // pred_check
      _
    $region51: #{tpu_custom_call.1} parent=1 // pred_check_branch
      %338 = sbr.rel (0) target = $region53
    $region52: #{tpu_custom_call.1} parent=1 // pred_region
      %339 = dma.done [#allocation12], 128
    $region53: #{tpu_custom_call.1} parent=1 // pred_fallthru
      _
    // Predicated region
    $region54: #{tpu_custom_call.1} parent=1 // pred_check
      _
    $region55: #{tpu_custom_call.1} parent=1 // pred_check_branch
      %341 = sbr.rel (0) target = $region57
    $region56: #{tpu_custom_call.1} parent=1 // pred_region
      %342 = dma.done [#allocation12], 128
    $region57: #{tpu_custom_call.1} parent=1 // pred_fallthru
      _
    %343 = vsyncpa [#allocation3], 1
    %344 = vsyncpa [#allocation6], 1
    %345 = vsyncpa [#allocation9], 1
    %346 = vsyncpa [#allocation4], 1
    %347 = vsyncpa [#allocation12], 1

</llo_original>
